<compile_context>
chip_gen: v6e
topology: v6e:2x2x1
jax: 0.10.0
libtpu: 0.0.40
codegen_flags: <defaults>
</compile_context>

<pallas_src>
import functools

import jax
import jax.numpy as jnp
from jax.experimental import pallas as pl
from jax.experimental.pallas import tpu as pltpu

_LANE = 128     # lane width (last dim)
_SUBLANE = 8    # f32 sublane quantum (second-to-last dim)


def _round_up(x, m):
    return ((x + m - 1) // m) * m


def _lin_regressor_kernel(x_ref, w_ref, b_ref, o_ref, *, activation, valid_out):
    """One batch tile: y = x @ W + b (+ optional output activation)."""
    y = jnp.dot(x_ref[...], w_ref[...], preferred_element_type=jnp.float32)
    y = y + b_ref[...]
    if activation == "relu":
        y = jnp.maximum(y, 0.0)
    elif activation == "softmax":
        # Mask padded output lanes so they do not contribute to the softmax sum.
        col = jax.lax.broadcasted_iota(jnp.int32, y.shape, dimension=1)
        y = jnp.where(col < valid_out, y, -jnp.inf)
        y = y - jnp.max(y, axis=-1, keepdims=True)
        e = jnp.exp(y)
        y = e * pl.reciprocal(jnp.sum(e, axis=-1, keepdims=True), approx=False)
    o_ref[...] = y.astype(o_ref.dtype)


def lin_regressor_forward(x, params, *, activation="identity", tm_max=512):
    """x: (B, input_dim). params: dict with w:(in, out), b:(out,)."""
    if activation not in ("identity", "relu", "softmax"):
        raise NotImplementedError("Unsupported activation function")

    B, d_in = x.shape
    w, b = params["w"], params["b"]
    d_out = w.shape[1]

    # Lane-dense padding only of the output feature dim; sublane padding + tiling
    # of the batch.  Input feature dim is left unpadded (block dim == full extent).
    d_out_p = _round_up(d_out, _LANE)
    b8 = _round_up(B, _SUBLANE)
    tm = min(_round_up(tm_max, _SUBLANE), b8)
    b_p = _round_up(b8, tm)

    x_p = x.astype(jnp.float32)
    if b_p != B:
        x_p = jnp.pad(x_p, ((0, b_p - B), (0, 0)))

    w_p = w.astype(jnp.float32)
    b_arr = jnp.reshape(b, (1, d_out)).astype(jnp.float32)
    if d_out_p != d_out:
        w_p = jnp.pad(w_p, ((0, 0), (0, d_out_p - d_out)))
        b_arr = jnp.pad(b_arr, ((0, 0), (0, d_out_p - d_out)))

    grid = (b_p // tm,)
    kernel = functools.partial(
        _lin_regressor_kernel, activation=activation, valid_out=d_out)

    cost = pl.CostEstimate(
        flops=2 * b_p * d_in * d_out_p,
        transcendentals=(b_p * d_out_p) if activation == "softmax" else 0,
        bytes_accessed=4 * (b_p * d_in + d_in * d_out_p
                            + d_out_p + b_p * d_out_p),
    )

    out_p = pl.pallas_call(
        kernel,
        out_shape=jax.ShapeDtypeStruct((b_p, d_out_p), jnp.float32),
        grid=grid,
        in_specs=[
            pl.BlockSpec((tm, d_in), lambda i: (i, 0)),          # x: tiled over batch
            pl.BlockSpec((d_in, d_out_p), lambda i: (0, 0)),     # W: resident
            pl.BlockSpec((1, d_out_p), lambda i: (0, 0)),        # b: resident
        ],
        out_specs=pl.BlockSpec((tm, d_out_p), lambda i: (i, 0)),
        compiler_params=pltpu.CompilerParams(
            dimension_semantics=("parallel",)),
        cost_estimate=cost,
    )(x_p, w_p, b_arr)

    return out_p[:B, :d_out]


def init_lin_regressor_params(key, input_dim, output_dim):
    """PyTorch nn.Linear default init: U(-1/sqrt(fan_in), 1/sqrt(fan_in))."""
    kw, kb = jax.random.split(key)
    bound = 1.0 / (input_dim ** 0.5)
    w = jax.random.uniform(kw, (input_dim, output_dim), jnp.float32, -bound, bound)
    b = jax.random.uniform(kb, (output_dim,), jnp.float32, -bound, bound)
    return dict(w=w, b=b)


def lin_regressor_ref(x, p, activation="identity"):
    """Pure-JAX reference."""
    y = x @ p["w"] + p["b"]
    if activation == "relu":
        y = jnp.maximum(y, 0.0)
    elif activation == "softmax":
        y = jax.nn.softmax(y, axis=-1)
    return y


if __name__ == "__main__":
    key = jax.random.PRNGKey(0)
    kx, kp, kx2 = jax.random.split(key, 3)

    input_dim = 16
    output_dim = 4

    params = init_lin_regressor_params(kp, input_dim, output_dim)

    # Small default-config case (identity output activation).
    x_small = jax.random.normal(kx, (8, input_dim), jnp.float32)
    out = jax.block_until_ready(lin_regressor_forward(x_small, params))
    ref = lin_regressor_ref(x_small, params)
    assert out.shape == (8, output_dim)
    assert jnp.allclose(out, ref, atol=1e-5, rtol=1e-5), "identity mismatch"

    # relu / softmax output-activation variants.
    out_r = jax.block_until_ready(
        lin_regressor_forward(x_small, params, activation="relu"))
    assert jnp.allclose(out_r, lin_regressor_ref(x_small, params, "relu"),
                        atol=1e-5, rtol=1e-5), "relu mismatch"
    out_s = jax.block_until_ready(
        lin_regressor_forward(x_small, params, activation="softmax"))
    assert jnp.allclose(out_s, lin_regressor_ref(x_small, params, "softmax"),
                        atol=1e-5, rtol=1e-5), "softmax mismatch"

    # Larger batch exercising the multi-step, double-buffered grid.
    x_big = jax.random.normal(kx2, (1030, input_dim), jnp.float32)
    out_big = jax.block_until_ready(lin_regressor_forward(x_big, params))
    ref_big = lin_regressor_ref(x_big, params)
    assert out_big.shape == (1030, output_dim)
    assert jnp.allclose(out_big, ref_big, atol=1e-5, rtol=1e-5), "tiled mismatch"

    print("KERNEL_OK")
</pallas_src>

<mosaic_0001>
module attributes {stable_mosaic.version = 11 : i64} {
  func.func @_lin_regressor_kernel(%arg0: i32, %arg1: memref<8x16xf32, #tpu.memory_space<vmem>>, %arg2: memref<16x128xf32, #tpu.memory_space<vmem>>, %arg3: memref<1x128xf32, #tpu.memory_space<vmem>>, %arg4: memref<8x128xf32, #tpu.memory_space<vmem>>) attributes {dimension_semantics = [#tpu.dimension_semantics<parallel>], iteration_bounds = array<i64: 1>, scalar_prefetch = 0 : i64, scratch_operands = 0 : i64, tpu.core_type = #tpu.core_type<tc>, window_params = [{transform_indices = @transform_0, window_bounds = array<i64: 8, 16>}, {pipeline_mode = #tpu.pipeline_mode<synchronous>, transform_indices = @transform_1, window_bounds = array<i64: 16, 128>}, {pipeline_mode = #tpu.pipeline_mode<synchronous>, transform_indices = @transform_2, window_bounds = array<i64: 1, 128>}, {transform_indices = @transform_3, window_bounds = array<i64: 8, 128>}]} {
    %c0 = arith.constant 0 : index
    %c0_0 = arith.constant 0 : index
    %0 = vector.load %arg1[%c0, %c0_0] : memref<8x16xf32, #tpu.memory_space<vmem>>, vector<8x16xf32>
    %c0_1 = arith.constant 0 : index
    %c0_2 = arith.constant 0 : index
    %1 = vector.load %arg2[%c0_1, %c0_2] : memref<16x128xf32, #tpu.memory_space<vmem>>, vector<16x128xf32>
    %cst = arith.constant dense<0.000000e+00> : vector<8x128xf32>
    %2 = tpu.matmul %0, %1, %cst {dimension_numbers = #tpu.dot_dimension_numbers<[1], [0], [0], [1], [0, 0, 1, 1], [], []>} : vector<8x16xf32>, vector<16x128xf32>, vector<8x128xf32> -> vector<8x128xf32>
    %c0_3 = arith.constant 0 : index
    %c0_4 = arith.constant 0 : index
    %3 = vector.load %arg3[%c0_3, %c0_4] : memref<1x128xf32, #tpu.memory_space<vmem>>, vector<1x128xf32>
    %4 = vector.broadcast %3 : vector<1x128xf32> to vector<8x128xf32>
    %5 = arith.addf %2, %4 : vector<8x128xf32>
    %c0_5 = arith.constant 0 : index
    %c0_6 = arith.constant 0 : index
    %6 = vector.load %arg4[%c0_5, %c0_6] : memref<8x128xf32, #tpu.memory_space<vmem>>, vector<8x128xf32>
    tpu.vector_store %arg4[%c0_5, %c0_6], %5 {strides = array<i32>} : memref<8x128xf32, #tpu.memory_space<vmem>>, vector<8x128xf32>,
    return
  }
  func.func @transform_0(%arg0: i32) -> (i32, i32) {
    %c0_i32 = arith.constant 0 : i32
    %c0_i32_0 = arith.constant 0 : i32
    return %arg0, %c0_i32 : i32, i32
  }
  func.func @transform_1(%arg0: i32) -> (i32, i32) {
    %c0_i32 = arith.constant 0 : i32
    %c0_i32_0 = arith.constant 0 : i32
    %c0_i32_1 = arith.constant 0 : i32
    return %c0_i32, %c0_i32_0 : i32, i32
  }
  func.func @transform_2(%arg0: i32) -> (i32, i32) {
    %c0_i32 = arith.constant 0 : i32
    %c0_i32_0 = arith.constant 0 : i32
    %c0_i32_1 = arith.constant 0 : i32
    return %c0_i32, %c0_i32_0 : i32, i32
  }
  func.func @transform_3(%arg0: i32) -> (i32, i32) {
    %c0_i32 = arith.constant 0 : i32
    %c0_i32_0 = arith.constant 0 : i32
    return %arg0, %c0_i32 : i32, i32
  }
}

</mosaic_0001>

<llo_original>
// kernel: tpu_custom_call.1
$region0: #{tpu_custom_call.1}
  #allocation0 [shape = 'u32[]', space=smem, size = 0x4, offset = 0x4, fixed_abs, tag = 'smem constant byte address 0x4 - core index']
  #allocation1 [shape = 'u32[144,128]{1,0:T(1,128)}', space=vmem, size = 0x12000, scoped, tag = 'internal scratch']
  %s0 = inlined_call_operand.hbm [shape: f32[8,16], index: 0, kind: input, shape index: {}]
  %s1 = inlined_call_operand.hbm [shape: f32[16,128], index: 1, kind: input, shape index: {}]
  %s2 = inlined_call_operand.vmem [shape: f32[1,128], index: 2, kind: input, shape index: {}]
  %s3 = inlined_call_operand.hbm [shape: f32[8,128], index: 3, kind: output, shape index: {}]
  %s4 = sld [smem:[#allocation0]]
  $region30: #{tpu_custom_call.1} parent=0
    _
  %s6 = ssub.s32 1, %s4
  %s7 = scalar_select 0, %s6, %s4
  $region1: #{tpu_custom_call.1} parent=0
    #allocation2 [shape = 'u8[4096]{0}', space=vmem, size = 0x1000, scoped, tag = 'input window, operand 0, single buffered']
    #allocation3 [shape = 's32[1]{0}', space=sflag, size = 0x4, scoped, tag = 'scoped memory for tpu_custom_call.1']
    #allocation4 [shape = 's32[1]{0}', space=sflag, size = 0x4, scoped, tag = 'scoped memory for tpu_custom_call.1']
    #allocation5 [shape = 'u8[8192]{0}', space=vmem, size = 0x2000, scoped, tag = 'input window, operand 1, single buffered']
    #allocation6 [shape = 's32[1]{0}', space=sflag, size = 0x4, scoped, tag = 'scoped memory for tpu_custom_call.1']
    #allocation7 [shape = 'u8[4096]{0}', space=vmem, size = 0x1000, scoped, tag = 'output window, operand 0, single buffered']
    %8 = vsyncpa [#allocation3], 0
    %9 = vsyncpa [#allocation6], 0
    %10 = vsyncpa [#allocation4], 0
    // Predicated region
    $region2: #{tpu_custom_call.1} parent=1 // pred_check
      _
    $region3: #{tpu_custom_call.1} parent=1 // pred_check_branch
      %12 = sbr.rel (0) target = $region5
    $region4: #{tpu_custom_call.1} parent=1 // pred_region
      %s14 = ssub.s32 128, 128
      %15 = vsyncadd [#allocation3], %s14
      %s17 = sshll.u32 [#allocation2], 4
      %s18 = int_to_ptr.vmem [resolvable:$true] %s17
      %20 = dma.hbm_to_vmem [thread:$0]  %s0, 128, %s18, [#allocation3]
    $region5: #{tpu_custom_call.1} parent=1 // pred_fallthru
      _
    // Predicated region
    $region6: #{tpu_custom_call.1} parent=1 // pred_check
      _
    $region7: #{tpu_custom_call.1} parent=1 // pred_check_branch
      %22 = sbr.rel (0) target = $region9
    $region8: #{tpu_custom_call.1} parent=1 // pred_region
      %s24 = ssub.s32 256, 256
      %25 = vsyncadd [#allocation6], %s24
      %s26 = sshll.u32 [#allocation5], 4
      %s27 = int_to_ptr.vmem [resolvable:$true] %s26
      %32 = dma.hbm_to_vmem [thread:$0]  %s1, 256, %s27, [#allocation6], 128, 128, 8
    $region9: #{tpu_custom_call.1} parent=1 // pred_fallthru
      _
    // Predicated region
    $region10: #{tpu_custom_call.1} parent=1 // pred_check
      _
    $region11: #{tpu_custom_call.1} parent=1 // pred_check_branch
      %34 = sbr.rel (0) target = $region13
    $region12: #{tpu_custom_call.1} parent=1 // pred_region
      _
    $region13: #{tpu_custom_call.1} parent=1 // pred_fallthru
      _
    // Predicated region
    $region14: #{tpu_custom_call.1} parent=1 // pred_check
      _
    $region15: #{tpu_custom_call.1} parent=1 // pred_check_branch
      %36 = sbr.rel (0) target = $region17
    $region16: #{tpu_custom_call.1} parent=1 // pred_region
      %37 = dma.done [#allocation3], 128
    $region17: #{tpu_custom_call.1} parent=1 // pred_fallthru
      _
    // Predicated region
    $region18: #{tpu_custom_call.1} parent=1 // pred_check
      _
    $region19: #{tpu_custom_call.1} parent=1 // pred_check_branch
      %39 = sbr.rel (0) target = $region21
    $region20: #{tpu_custom_call.1} parent=1 // pred_region
      %40 = dma.done [#allocation6], 256
    $region21: #{tpu_custom_call.1} parent=1 // pred_fallthru
      _
    %v41 = vld [vmem:[#allocation2] sm:$0xff]
    %v42 = vld [vmem:[#allocation5] sm:$0xff]
    %v43 = vld [vmem:[#allocation5 + $0x8] sm:$0xff]
    %v44 = vld [vmem:[%s2] sm:$0x1]
    %v46 = vlaneseq
    %v47 = vshrl.u32 %v46, 7
    %v48 = vsub.s32 0, %v47
    %v49 = vrot.slane %v44, %v48
    %vm51 = vcmask 130048
    %v53 = vsel %vm51, %v41, 0
    %55 = vmatprep.subr.mxu0 0.0
    %56 = vmatpush1.msra.mxu0 0.0
    %57 = vmatprep.subr.mxu0 0.0
    %58 = vmatpush1.msra.mxu0 0.0
    %59 = vmatprep.subr.mxu0 0.0
    %60 = vmatpush1.msra.mxu0 0.0
    %61 = vmatprep.subr.mxu0 0.0
    %62 = vmatpush1.msra.mxu0 0.0
    %63 = vmatprep.subr.mxu0 0.0
    %64 = vmatpush1.msra.mxu0 0.0
    %65 = vmatprep.subr.mxu0 0.0
    %66 = vmatpush1.msra.mxu0 0.0
    %67 = vmatprep.subr.mxu0 0.0
    %68 = vmatpush1.msra.mxu0 0.0
    %69 = vmatprep.subr.mxu0 0.0
    %70 = vmatpush1.msra.mxu0 0.0
    %71 = vmatprep.subr.mxu0 0.0
    %72 = vmatpush1.msra.mxu0 0.0
    %73 = vmatprep.subr.mxu0 0.0
    %74 = vmatpush1.msra.mxu0 0.0
    %75 = vmatprep.subr.mxu0 0.0
    %76 = vmatpush1.msra.mxu0 0.0
    %77 = vmatprep.subr.mxu0 0.0
    %78 = vmatpush1.msra.mxu0 0.0
    %79 = vmatprep.subr.mxu0 0.0
    %80 = vmatpush1.msra.mxu0 0.0
    %81 = vmatprep.subr.mxu0 0.0
    %82 = vmatpush1.msra.mxu0 0.0
    %83 = vmatprep.subr.mxu0 0.0
    %84 = vmatpush1.msra.mxu0 %v43
    %85 = vmatprep.subr.mxu0 0.0
    %86 = vmatpush1.msra.mxu0 %v42
    %87 = vmatprep.subr.mxu0 0.0
    %88 = vmatpush2.msra.mxu0 0.0
    %89 = vmatprep.subr.mxu0 0.0
    %90 = vmatpush2.msra.mxu0 0.0
    %91 = vmatprep.subr.mxu0 0.0
    %92 = vmatpush2.msra.mxu0 0.0
    %93 = vmatprep.subr.mxu0 0.0
    %94 = vmatpush2.msra.mxu0 0.0
    %95 = vmatprep.subr.mxu0 0.0
    %96 = vmatpush2.msra.mxu0 0.0
    %97 = vmatprep.subr.mxu0 0.0
    %98 = vmatpush2.msra.mxu0 0.0
    %99 = vmatprep.subr.mxu0 0.0
    %100 = vmatpush2.msra.mxu0 0.0
    %101 = vmatprep.subr.mxu0 0.0
    %102 = vmatpush2.msra.mxu0 0.0
    %103 = vmatprep.subr.mxu0 0.0
    %104 = vmatpush2.msra.mxu0 0.0
    %105 = vmatprep.subr.mxu0 0.0
    %106 = vmatpush2.msra.mxu0 0.0
    %107 = vmatprep.subr.mxu0 0.0
    %108 = vmatpush2.msra.mxu0 0.0
    %109 = vmatprep.subr.mxu0 0.0
    %110 = vmatpush2.msra.mxu0 0.0
    %111 = vmatprep.subr.mxu0 0.0
    %112 = vmatpush2.msra.mxu0 0.0
    %113 = vmatprep.subr.mxu0 0.0
    %114 = vmatpush2.msra.mxu0 0.0
    %115 = vmatprep.subr.mxu0 0.0
    %116 = vmatpush2.msra.mxu0 0.0
    %117 = vmatprep.subr.mxu0 0.0
    %118 = vmatpush2.msra.mxu0 0.0
    %119 = vmatprep.mubr.f32.mxu0 0.0
    %120 = vmatmul.mubr.f32.gmra.mxu0 %v53
    %v121 = vpop.f32.mrf.mxu0
    %v122 = vadd.f32 %v49, %v121
    %v123 = vpop.f32.mrf.mxu0
    %124 = vdwg.mxu0
    %125 = vst [vmem:[#allocation7] sm:$0xff] %v122
    // Predicated region
    $region22: #{tpu_custom_call.1} parent=1 // pred_check
      _
    $region23: #{tpu_custom_call.1} parent=1 // pred_check_branch
      %127 = sbr.rel (0) target = $region25
    $region24: #{tpu_custom_call.1} parent=1 // pred_region
      %s129 = ssub.s32 128, 128
      %130 = vsyncadd [#allocation4], %s129
      %s132 = sshll.u32 [#allocation7], 4
      %s133 = int_to_ptr.vmem [resolvable:$true] %s132
      %135 = dma.vmem_to_hbm [thread:$0]  %s133, 128, %s3, [#allocation4]
    $region25: #{tpu_custom_call.1} parent=1 // pred_fallthru
      _
    // Predicated region
    $region26: #{tpu_custom_call.1} parent=1 // pred_check
      _
    $region27: #{tpu_custom_call.1} parent=1 // pred_check_branch
      %137 = sbr.rel (0) target = $region29
    $region28: #{tpu_custom_call.1} parent=1 // pred_region
      %138 = dma.done [#allocation4], 128
    $region29: #{tpu_custom_call.1} parent=1 // pred_fallthru
      _
    %139 = vsyncpa [#allocation3], 1
    %140 = vsyncpa [#allocation6], 1
    %141 = vsyncpa [#allocation4], 1

</llo_original>
